<compile_context>
chip_gen: v5e
topology: v5e:2x2
jax: 0.10.0
libtpu: 0.0.40
codegen_flags: <defaults>
</compile_context>

<pallas_src>
import math
import functools

import jax
import jax.numpy as jnp
from jax.experimental import pallas as pl
from jax.experimental.pallas import tpu as pltpu


# ----------------------------------------------------------------------------
# Kernel
# ----------------------------------------------------------------------------
def _attn_kernel(x_ref, wqkv_ref, bqkv_ref, wo_ref, bo_ref, *rest,
                 bb, s, e, p_len, causal):
    """One grid step = `bb` batch elements (flattened to bb*s rows)."""
    if p_len > 0:
        pk_ref, pv_ref = rest[0], rest[1]
        out_ref, k_out_ref, v_out_ref = rest[2], rest[3], rest[4]
    else:
        out_ref, k_out_ref, v_out_ref = rest[0], rest[1], rest[2]

    x = x_ref[...]                       # (bb*s, e), native dtype into the MXU
    dt = x.dtype

    # Fused Q/K/V projection: one MXU matmul, N = 3e, f32 accumulation.
    qkv = (jnp.dot(x, wqkv_ref[...], preferred_element_type=jnp.float32)
           + bqkv_ref[...])              # (bb*s, 3e) f32
    q_f = qkv[:, :e]                     # scale already folded into Wq/bq
    k_f = qkv[:, e:2 * e]
    v_f = qkv[:, 2 * e:]

    # Present-KV: only the *current* rows are written out; the past cache is
    # never round-tripped through the kernel (wrapper does the concat).
    k_out_ref[...] = k_f.astype(k_out_ref.dtype)
    v_out_ref[...] = v_f.astype(v_out_ref.dtype)

    q = q_f.astype(dt).reshape(bb, s, e)
    k_cur = k_f.astype(dt).reshape(bb, s, e)
    v_cur = v_f.astype(dt).reshape(bb, s, e)

    # Scores: contract last dims directly (no K transpose materialized).
    s_cur = jnp.einsum('bqd,bkd->bqk', q, k_cur,
                       preferred_element_type=jnp.float32)       # (bb, s, s)

    if p_len > 0:
        # Cache path (module semantics: no causal mask when past_kv is given).
        pk = pk_ref[...]                                         # (bb, p, e)
        pv = pv_ref[...]
        s_past = jnp.einsum('bqd,bkd->bqk', q, pk,
                            preferred_element_type=jnp.float32)  # (bb, s, p)

        # Split softmax over [past | current] — avoids concatenating K/V (and
        # the scores) entirely; math identical to softmax over the full row.
        m = jnp.maximum(jnp.max(s_past, axis=-1, keepdims=True),
                        jnp.max(s_cur, axis=-1, keepdims=True))
        e_past = jnp.exp(s_past - m)
        e_cur = jnp.exp(s_cur - m)
        inv = pl.reciprocal(jnp.sum(e_past, axis=-1, keepdims=True)
                            + jnp.sum(e_cur, axis=-1, keepdims=True),
                            approx=True)
        p_past = e_past * inv
        p_cur = e_cur * inv
        # Dropout(p=0.2) is identity in eval mode.
        # TODO(synk): training-mode dropout (pltpu.prng_* Bernoulli mask).
        o = (jnp.einsum('bqk,bkd->bqd', p_past.astype(pv.dtype), pv,
                        preferred_element_type=jnp.float32)
             + jnp.einsum('bqk,bkd->bqd', p_cur.astype(dt), v_cur,
                          preferred_element_type=jnp.float32))   # (bb, s, e)
    else:
        scores = s_cur
        if causal:  # static: seq_len > 1 and no past_kv
            row = jax.lax.broadcasted_iota(jnp.int32, scores.shape, 1)
            col = jax.lax.broadcasted_iota(jnp.int32, scores.shape, 2)
            scores = jnp.where(col > row, -jnp.inf, scores)
        m = jnp.max(scores, axis=-1, keepdims=True)
        ex = jnp.exp(scores - m)
        probs = ex * pl.reciprocal(jnp.sum(ex, axis=-1, keepdims=True),
                                   approx=True)
        # Dropout(p=0.2) identity in eval mode (see TODO above).
        o = jnp.einsum('bqk,bkd->bqd', probs.astype(dt), v_cur,
                       preferred_element_type=jnp.float32)       # (bb, s, e)

    # Output projection over the flattened rows.
    out = (jnp.dot(o.reshape(bb * s, e).astype(dt), wo_ref[...],
                   preferred_element_type=jnp.float32) + bo_ref[...])
    out_ref[...] = out.astype(out_ref.dtype)


def _pick_batch_block(batch, seq, target_rows=256):
    """Batch elements per grid step: enough rows to feed the MXU (~256)."""
    bb = max(1, min(batch, max(1, target_rows // max(seq, 1))))
    while batch % bb:
        bb -= 1
    return bb


# ----------------------------------------------------------------------------
# Wrapper
# ----------------------------------------------------------------------------
def simple_attention_with_kv_cache(x, params, past_kv=None, use_cache=False):
    """Mirrors SimpleAttentionWithKVCache.forward (num_heads=1, eval mode)."""
    B, S, E = x.shape
    D = E  # head_dim == embed_dim for num_heads == 1
    scale = 1.0 / math.sqrt(D)

    wq, bq, wk, bk, wv, bv, wo, bo = params
    # Fold the score scale into the Q projection and fuse Q/K/V weights.
    w_qkv = jnp.concatenate([wq * scale, wk, wv], axis=1)          # (E, 3E)
    b_qkv = jnp.concatenate([bq * scale, bk, bv]).reshape(1, 3 * E)
    bo2 = bo.reshape(1, E)

    BB = _pick_batch_block(B, S)       # batch elements per grid step
    n_blocks = B // BB
    R = BB * S                         # projection rows per grid step

    x2 = x.reshape(B * S, E)           # flatten rows for the projections

    in_specs = [
        pl.BlockSpec((R, E), lambda b: (b, 0)),          # x rows
        pl.BlockSpec((E, 3 * E), lambda b: (0, 0)),      # fused QKV weight
        pl.BlockSpec((1, 3 * E), lambda b: (0, 0)),      # fused QKV bias
        pl.BlockSpec((E, E), lambda b: (0, 0)),          # out-proj weight
        pl.BlockSpec((1, E), lambda b: (0, 0)),          # out-proj bias
    ]
    args = [x2, w_qkv, b_qkv, wo, bo2]

    if past_kv is not None:
        past_k, past_v = past_kv                         # (B, 1, P, D)
        P = past_k.shape[2]
        # TODO(synk): for long contexts (v7x 64 MiB VMEM) tile the cache along
        # its length with online-softmax accumulators instead of one block.
        in_specs += [pl.BlockSpec((BB, P, D), lambda b: (b, 0, 0)),
                     pl.BlockSpec((BB, P, D), lambda b: (b, 0, 0))]
        args += [past_k.reshape(B, P, D), past_v.reshape(B, P, D)]
    else:
        P = 0

    causal = (S > 1) and (past_kv is None)
    kernel = functools.partial(_attn_kernel, bb=BB, s=S, e=E,
                               p_len=P, causal=causal)

    out_flat, k_cur, v_cur = pl.pallas_call(
        kernel,
        out_shape=(jax.ShapeDtypeStruct((B * S, E), x.dtype),   # output rows
                   jax.ShapeDtypeStruct((B * S, D), x.dtype),   # current K rows
                   jax.ShapeDtypeStruct((B * S, D), x.dtype)),  # current V rows
        grid_spec=pltpu.PrefetchScalarGridSpec(
            num_scalar_prefetch=0,
            grid=(n_blocks,),
            in_specs=in_specs,
            out_specs=[pl.BlockSpec((R, E), lambda b: (b, 0)),
                       pl.BlockSpec((R, D), lambda b: (b, 0)),
                       pl.BlockSpec((R, D), lambda b: (b, 0))]),
        compiler_params=pltpu.CompilerParams(
            dimension_semantics=("parallel",)),
    )(*args)

    out = out_flat.reshape(B, S, E)
    if not use_cache:
        return out

    k_cur = k_cur.reshape(B, 1, S, D)
    v_cur = v_cur.reshape(B, 1, S, D)
    if past_kv is not None:
        # Cache update in the wrapper: kernel never writes the past cache out.
        present_kv = (jnp.concatenate([past_kv[0], k_cur], axis=2),
                      jnp.concatenate([past_kv[1], v_cur], axis=2))
    else:
        present_kv = (k_cur, v_cur)
    return out, present_kv


# ----------------------------------------------------------------------------
# Pure-JAX reference (mirrors the PyTorch forward, eval mode)
# ----------------------------------------------------------------------------
def reference_forward(x, params, past_kv=None):
    wq, bq, wk, bk, wv, bv, wo, bo = params
    B, S, E = x.shape
    D = E
    q = x @ wq + bq
    k_cur = x @ wk + bk
    v_cur = x @ wv + bv
    if past_kv is not None:
        pk, pv = past_kv
        k = jnp.concatenate([pk.reshape(B, -1, D), k_cur], axis=1)
        v = jnp.concatenate([pv.reshape(B, -1, D), v_cur], axis=1)
    else:
        k, v = k_cur, v_cur
    s = jnp.einsum("bqd,bkd->bqk", q, k) / math.sqrt(D)
    if S > 1 and past_kv is None:
        row = jnp.arange(S)[:, None]
        col = jnp.arange(S)[None, :]
        s = jnp.where(col > row, -jnp.inf, s)
    p = jax.nn.softmax(s, axis=-1)
    o = jnp.einsum("bqk,bkd->bqd", p, v)
    return o @ wo + bo, (k.reshape(B, 1, -1, D), v.reshape(B, 1, -1, D))


# ----------------------------------------------------------------------------
# Main
# ----------------------------------------------------------------------------
if __name__ == "__main__":
    B, S, E = 2, 8, 64      # batch, seq, embed_dim (num_heads=1 -> head_dim=64)
    P = 8                   # past KV length for the cache test

    key = jax.random.PRNGKey(0)
    ks = jax.random.split(key, 11)
    bound = 1.0 / math.sqrt(E)   # PyTorch Linear default init range

    def lin(kw, kb):
        w = jax.random.uniform(kw, (E, E), jnp.float32, -bound, bound)  # (in, out)
        b = jax.random.uniform(kb, (E,), jnp.float32, -bound, bound)
        return w, b

    wq, bq = lin(ks[0], ks[1])
    wk, bk = lin(ks[2], ks[3])
    wv, bv = lin(ks[4], ks[5])
    wo, bo = lin(ks[6], ks[7])
    params = (wq, bq, wk, bk, wv, bv, wo, bo)

    x = jax.random.normal(ks[8], (B, S, E), jnp.float32)
    past_k = jax.random.normal(ks[9], (B, 1, P, E), jnp.float32)
    past_v = jax.random.normal(ks[10], (B, 1, P, E), jnp.float32)

    # Case 1: prefill (no cache) -> causal mask applied.
    out1 = simple_attention_with_kv_cache(x, params, past_kv=None, use_cache=False)
    out1 = jax.block_until_ready(out1)
    ref1, _ = reference_forward(x, params, past_kv=None)

    # Case 2: call with past KV and use_cache=True -> no mask (module semantics).
    out2, (pk2, pv2) = simple_attention_with_kv_cache(
        x, params, past_kv=(past_k, past_v), use_cache=True)
    out2, pk2, pv2 = jax.block_until_ready((out2, pk2, pv2))
    ref2, (rk2, rv2) = reference_forward(x, params, past_kv=(past_k, past_v))

    # Tolerance loosened slightly vs. exact softmax because the kernel uses the
    # EUP approximate reciprocal for the softmax denominator.
    assert jnp.allclose(out1, ref1, atol=2e-3, rtol=2e-3)
    assert jnp.allclose(out2, ref2, atol=2e-3, rtol=2e-3)
    assert jnp.allclose(pk2, rk2, atol=1e-5, rtol=1e-5)
    assert jnp.allclose(pv2, rv2, atol=1e-5, rtol=1e-5)

    print("KERNEL_OK")
</pallas_src>

<mosaic_0001>
module attributes {stable_mosaic.version = 11 : i64} {
  func.func @_attn_kernel(%arg0: i32, %arg1: memref<16x64xf32, #tpu.memory_space<vmem>>, %arg2: memref<64x192xf32, #tpu.memory_space<vmem>>, %arg3: memref<1x192xf32, #tpu.memory_space<vmem>>, %arg4: memref<64x64xf32, #tpu.memory_space<vmem>>, %arg5: memref<1x64xf32, #tpu.memory_space<vmem>>, %arg6: memref<16x64xf32, #tpu.memory_space<vmem>>, %arg7: memref<16x64xf32, #tpu.memory_space<vmem>>, %arg8: memref<16x64xf32, #tpu.memory_space<vmem>>) attributes {dimension_semantics = [#tpu.dimension_semantics<parallel>], iteration_bounds = array<i64: 1>, scalar_prefetch = 0 : i64, scratch_operands = 0 : i64, tpu.core_type = #tpu.core_type<tc>, window_params = [{transform_indices = @transform_0, window_bounds = array<i64: 16, 64>}, {pipeline_mode = #tpu.pipeline_mode<synchronous>, transform_indices = @transform_1, window_bounds = array<i64: 64, 192>}, {pipeline_mode = #tpu.pipeline_mode<synchronous>, transform_indices = @transform_2, window_bounds = array<i64: 1, 192>}, {pipeline_mode = #tpu.pipeline_mode<synchronous>, transform_indices = @transform_3, window_bounds = array<i64: 64, 64>}, {pipeline_mode = #tpu.pipeline_mode<synchronous>, transform_indices = @transform_4, window_bounds = array<i64: 1, 64>}, {transform_indices = @transform_5, window_bounds = array<i64: 16, 64>}, {transform_indices = @transform_6, window_bounds = array<i64: 16, 64>}, {transform_indices = @transform_7, window_bounds = array<i64: 16, 64>}]} {
    %c0 = arith.constant 0 : index
    %c0_0 = arith.constant 0 : index
    %0 = vector.load %arg1[%c0, %c0_0] : memref<16x64xf32, #tpu.memory_space<vmem>>, vector<16x64xf32>
    %c0_1 = arith.constant 0 : index
    %c0_2 = arith.constant 0 : index
    %1 = vector.load %arg2[%c0_1, %c0_2] : memref<64x192xf32, #tpu.memory_space<vmem>>, vector<64x192xf32>
    %cst = arith.constant dense<0.000000e+00> : vector<16x192xf32>
    %2 = tpu.matmul %0, %1, %cst {dimension_numbers = #tpu.dot_dimension_numbers<[1], [0], [0], [1], [0, 0, 1, 1], [], []>} : vector<16x64xf32>, vector<64x192xf32>, vector<16x192xf32> -> vector<16x192xf32>
    %c0_3 = arith.constant 0 : index
    %c0_4 = arith.constant 0 : index
    %3 = vector.load %arg3[%c0_3, %c0_4] : memref<1x192xf32, #tpu.memory_space<vmem>>, vector<1x192xf32>
    %4 = vector.broadcast %3 : vector<1x192xf32> to vector<16x192xf32>
    %5 = arith.addf %2, %4 : vector<16x192xf32>
    %6 = vector.extract_strided_slice %5 {offsets = [0, 0], sizes = [16, 64], strides = [1, 1]} : vector<16x192xf32> to vector<16x64xf32>
    %7 = vector.extract_strided_slice %5 {offsets = [0, 64], sizes = [16, 64], strides = [1, 1]} : vector<16x192xf32> to vector<16x64xf32>
    %8 = vector.extract_strided_slice %5 {offsets = [0, 128], sizes = [16, 64], strides = [1, 1]} : vector<16x192xf32> to vector<16x64xf32>
    %c0_5 = arith.constant 0 : index
    %c0_6 = arith.constant 0 : index
    %9 = vector.load %arg7[%c0_5, %c0_6] : memref<16x64xf32, #tpu.memory_space<vmem>>, vector<16x64xf32>
    tpu.vector_store %arg7[%c0_5, %c0_6], %7 {strides = array<i32>} : memref<16x64xf32, #tpu.memory_space<vmem>>, vector<16x64xf32>,
    %c0_7 = arith.constant 0 : index
    %c0_8 = arith.constant 0 : index
    %10 = vector.load %arg8[%c0_7, %c0_8] : memref<16x64xf32, #tpu.memory_space<vmem>>, vector<16x64xf32>
    tpu.vector_store %arg8[%c0_7, %c0_8], %8 {strides = array<i32>} : memref<16x64xf32, #tpu.memory_space<vmem>>, vector<16x64xf32>,
    %11 = vector.shape_cast %6 : vector<16x64xf32> to vector<2x8x64xf32>
    %12 = vector.shape_cast %7 : vector<16x64xf32> to vector<2x8x64xf32>
    %13 = vector.shape_cast %8 : vector<16x64xf32> to vector<2x8x64xf32>
    "tpu.trace_start"() <{level = 10 : i32, message = "bqd,bkd->bqk"}> : () -> ()
    %cst_9 = arith.constant dense<0.000000e+00> : vector<2x8x8xf32>
    %14 = tpu.matmul %11, %12, %cst_9 {dimension_numbers = #tpu.dot_dimension_numbers<[2], [2], [1], [1], [0, 0, 0, 1, 1, 1], [0], [0]>} : vector<2x8x64xf32>, vector<2x8x64xf32>, vector<2x8x8xf32> -> vector<2x8x8xf32>
    "tpu.trace_stop"() : () -> ()
    %15 = tpu.iota {dimensions = array<i32: 1>} : vector<2x8x8xi32>
    %16 = tpu.iota {dimensions = array<i32: 2>} : vector<2x8x8xi32>
    %17 = arith.cmpi sgt, %16, %15 : vector<2x8x8xi32>
    %cst_10 = arith.constant 0xFF800000 : f32
    %18 = vector.broadcast %cst_10 : f32 to vector<2x8x8xf32>
    %19 = arith.select %17, %18, %14 : vector<2x8x8xi1>, vector<2x8x8xf32>
    %cst_11 = arith.constant dense<0xFF800000> : vector<2x8xf32>
    %20 = vector.multi_reduction <maximumf>, %19, %cst_11 [2] : vector<2x8x8xf32> to vector<2x8xf32>
    %21 = vector.shape_cast %20 : vector<2x8xf32> to vector<2x8x1xf32>
    %22 = vector.broadcast %21 : vector<2x8x1xf32> to vector<2x8x8xf32>
    %23 = arith.subf %19, %22 : vector<2x8x8xf32>
    %24 = math.exp %23 : vector<2x8x8xf32>
    %cst_12 = arith.constant dense<0.000000e+00> : vector<2x8xf32>
    %25 = vector.multi_reduction <add>, %24, %cst_12 [2] : vector<2x8x8xf32> to vector<2x8xf32>
    %26 = vector.shape_cast %25 : vector<2x8xf32> to vector<2x8x1xf32>
    %27 = tpu.reciprocal %26 {approx = true} : vector<2x8x1xf32> -> vector<2x8x1xf32>
    %28 = vector.broadcast %27 : vector<2x8x1xf32> to vector<2x8x8xf32>
    %29 = arith.mulf %24, %28 : vector<2x8x8xf32>
    "tpu.trace_start"() <{level = 10 : i32, message = "bqk,bkd->bqd"}> : () -> ()
    %cst_13 = arith.constant dense<0.000000e+00> : vector<2x8x64xf32>
    %30 = tpu.matmul %29, %13, %cst_13 {dimension_numbers = #tpu.dot_dimension_numbers<[2], [1], [1], [2], [0, 0, 0, 1, 1, 2], [0], [0]>} : vector<2x8x8xf32>, vector<2x8x64xf32>, vector<2x8x64xf32> -> vector<2x8x64xf32>
    "tpu.trace_stop"() : () -> ()
    %31 = vector.shape_cast %30 : vector<2x8x64xf32> to vector<16x64xf32>
    %c0_14 = arith.constant 0 : index
    %c0_15 = arith.constant 0 : index
    %32 = vector.load %arg4[%c0_14, %c0_15] : memref<64x64xf32, #tpu.memory_space<vmem>>, vector<64x64xf32>
    %cst_16 = arith.constant dense<0.000000e+00> : vector<16x64xf32>
    %33 = tpu.matmul %31, %32, %cst_16 {dimension_numbers = #tpu.dot_dimension_numbers<[1], [0], [0], [1], [0, 0, 1, 1], [], []>} : vector<16x64xf32>, vector<64x64xf32>, vector<16x64xf32> -> vector<16x64xf32>
    %c0_17 = arith.constant 0 : index
    %c0_18 = arith.constant 0 : index
    %34 = vector.load %arg5[%c0_17, %c0_18] : memref<1x64xf32, #tpu.memory_space<vmem>>, vector<1x64xf32>
    %35 = vector.broadcast %34 : vector<1x64xf32> to vector<16x64xf32>
    %36 = arith.addf %33, %35 : vector<16x64xf32>
    %c0_19 = arith.constant 0 : index
    %c0_20 = arith.constant 0 : index
    %37 = vector.load %arg6[%c0_19, %c0_20] : memref<16x64xf32, #tpu.memory_space<vmem>>, vector<16x64xf32>
    tpu.vector_store %arg6[%c0_19, %c0_20], %36 {strides = array<i32>} : memref<16x64xf32, #tpu.memory_space<vmem>>, vector<16x64xf32>,
    return
  }
  func.func @transform_0(%arg0: i32) -> (i32, i32) {
    %c0_i32 = arith.constant 0 : i32
    %c0_i32_0 = arith.constant 0 : i32
    return %arg0, %c0_i32 : i32, i32
  }
  func.func @transform_1(%arg0: i32) -> (i32, i32) {
    %c0_i32 = arith.constant 0 : i32
    %c0_i32_0 = arith.constant 0 : i32
    %c0_i32_1 = arith.constant 0 : i32
    return %c0_i32, %c0_i32_0 : i32, i32
  }
  func.func @transform_2(%arg0: i32) -> (i32, i32) {
    %c0_i32 = arith.constant 0 : i32
    %c0_i32_0 = arith.constant 0 : i32
    %c0_i32_1 = arith.constant 0 : i32
    return %c0_i32, %c0_i32_0 : i32, i32
  }
  func.func @transform_3(%arg0: i32) -> (i32, i32) {
    %c0_i32 = arith.constant 0 : i32
    %c0_i32_0 = arith.constant 0 : i32
    %c0_i32_1 = arith.constant 0 : i32
    return %c0_i32, %c0_i32_0 : i32, i32
  }
  func.func @transform_4(%arg0: i32) -> (i32, i32) {
    %c0_i32 = arith.constant 0 : i32
    %c0_i32_0 = arith.constant 0 : i32
    %c0_i32_1 = arith.constant 0 : i32
    return %c0_i32, %c0_i32_0 : i32, i32
  }
  func.func @transform_5(%arg0: i32) -> (i32, i32) {
    %c0_i32 = arith.constant 0 : i32
    %c0_i32_0 = arith.constant 0 : i32
    return %arg0, %c0_i32 : i32, i32
  }
  func.func @transform_6(%arg0: i32) -> (i32, i32) {
    %c0_i32 = arith.constant 0 : i32
    %c0_i32_0 = arith.constant 0 : i32
    return %arg0, %c0_i32 : i32, i32
  }
  func.func @transform_7(%arg0: i32) -> (i32, i32) {
    %c0_i32 = arith.constant 0 : i32
    %c0_i32_0 = arith.constant 0 : i32
    return %arg0, %c0_i32 : i32, i32
  }
}

</mosaic_0001>

<llo_original>
// kernel: tpu_custom_call.1
$region0: #{tpu_custom_call.1}
  #allocation0 [shape = 'u32[]', space=smem, size = 0x4, offset = 0x4, fixed_abs, tag = 'smem constant byte address 0x4 - core index']
  #allocation1 [shape = 'u32[72,128]{1,0:T(1,128)}', space=vmem, size = 0x9000, scoped, tag = 'internal scratch']
  %s0 = inlined_call_operand.hbm [shape: f32[16,64], index: 0, kind: input, shape index: {}]
  %s1 = inlined_call_operand.hbm [shape: f32[64,192], index: 1, kind: input, shape index: {}]
  %s2 = inlined_call_operand.hbm [shape: f32[1,192], index: 2, kind: input, shape index: {}]
  %s3 = inlined_call_operand.hbm [shape: f32[64,64], index: 3, kind: input, shape index: {}]
  %s4 = inlined_call_operand.vmem [shape: f32[1,64], index: 4, kind: input, shape index: {}]
  %s5 = inlined_call_operand.hbm [shape: f32[16,64], index: 5, kind: output, shape index: {0}]
  %s6 = inlined_call_operand.hbm [shape: f32[16,64], index: 6, kind: output, shape index: {1}]
  %s7 = inlined_call_operand.hbm [shape: f32[16,64], index: 7, kind: output, shape index: {2}]
  %8 = xla_tuple %s5, %s6, %s7
  %s9 = sld [smem:[#allocation0]]
  $region62: #{tpu_custom_call.1} parent=0
    _
  %s11 = ssub.s32 1, %s9
  %s12 = scalar_select 0, %s11, %s9
  $region1: #{tpu_custom_call.1} parent=0
    #allocation2 [shape = 'u8[8192]{0}', space=vmem, size = 0x2000, scoped, tag = 'input window, operand 0, single buffered']
    #allocation3 [shape = 's32[1]{0}', space=sflag, size = 0x4, scoped, tag = 'scoped memory for tpu_custom_call.1']
    #allocation4 [shape = 's32[1]{0}', space=sflag, size = 0x4, scoped, tag = 'scoped memory for tpu_custom_call.1']
    #allocation5 [shape = 'u8[65536]{0}', space=vmem, size = 0x10000, scoped, tag = 'input window, operand 1, single buffered']
    #allocation6 [shape = 's32[1]{0}', space=sflag, size = 0x4, scoped, tag = 'scoped memory for tpu_custom_call.1']
    #allocation7 [shape = 'u8[1024]{0}', space=vmem, size = 0x400, scoped, tag = 'input window, operand 2, single buffered']
    #allocation8 [shape = 'u8[32768]{0}', space=vmem, size = 0x8000, scoped, tag = 'input window, operand 3, single buffered']
    #allocation9 [shape = 's32[1]{0}', space=sflag, size = 0x4, scoped, tag = 'scoped memory for tpu_custom_call.1']
    #allocation10 [shape = 'u8[8192]{0}', space=vmem, size = 0x2000, scoped, tag = 'output window, operand 0, single buffered']
    #allocation11 [shape = 'u8[8192]{0}', space=vmem, size = 0x2000, scoped, tag = 'output window, operand 1, single buffered']
    #allocation12 [shape = 's32[1]{0}', space=sflag, size = 0x4, scoped, tag = 'scoped memory for tpu_custom_call.1']
    #allocation13 [shape = 'u8[8192]{0}', space=vmem, size = 0x2000, scoped, tag = 'output window, operand 2, single buffered']
    %13 = vsyncpa [#allocation3], 0
    %14 = vsyncpa [#allocation6], 0
    %15 = vsyncpa [#allocation9], 0
    %16 = vsyncpa [#allocation4], 0
    %17 = vsyncpa [#allocation12], 0
    // Predicated region
    $region2: #{tpu_custom_call.1} parent=1 // pred_check
      _
    $region3: #{tpu_custom_call.1} parent=1 // pred_check_branch
      %19 = sbr.rel (0) target = $region5
    $region4: #{tpu_custom_call.1} parent=1 // pred_region
      %21 = vsyncadd [#allocation3], 0
      %s22 = sshll.u32 %s0, 4
      %s23 = int_to_ptr.hbm [resolvable:$true] %s22
      %s24 = sshll.u32 [#allocation2], 4
      %s25 = int_to_ptr.vmem [resolvable:$true] %s24
      %30 = dma.hbm_to_vmem [thread:$0]  %s23, 256, %s25, [#allocation3], 128, 128, 8
    $region5: #{tpu_custom_call.1} parent=1 // pred_fallthru
      _
    // Predicated region
    $region6: #{tpu_custom_call.1} parent=1 // pred_check
      _
    $region7: #{tpu_custom_call.1} parent=1 // pred_check_branch
      %32 = sbr.rel (0) target = $region9
    $region8: #{tpu_custom_call.1} parent=1 // pred_region
      %34 = vsyncadd [#allocation6], 0
      %s35 = sshll.u32 %s1, 4
      %s36 = int_to_ptr.hbm [resolvable:$true] %s35
      %s37 = sshll.u32 [#allocation5], 4
      %s38 = int_to_ptr.vmem [resolvable:$true] %s37
      %43 = dma.hbm_to_vmem [thread:$0]  %s36, 2048, %s38, [#allocation6], 256, 256, 16
    $region9: #{tpu_custom_call.1} parent=1 // pred_fallthru
      _
    // Predicated region
    $region10: #{tpu_custom_call.1} parent=1 // pred_check
      _
    $region11: #{tpu_custom_call.1} parent=1 // pred_check_branch
      %45 = sbr.rel (0) target = $region13
    $region12: #{tpu_custom_call.1} parent=1 // pred_region
      %47 = vsyncadd [#allocation6], 0
      %s49 = sshll.u32 %s2, 4
      %s50 = int_to_ptr.hbm [resolvable:$true] %s49
      %s51 = sshll.u32 [#allocation7], 4
      %s52 = int_to_ptr.vmem [resolvable:$true] %s51
      %54 = dma.hbm_to_vmem [thread:$0]  %s50, 32, %s52, [#allocation6]
    $region13: #{tpu_custom_call.1} parent=1 // pred_fallthru
      _
    // Predicated region
    $region14: #{tpu_custom_call.1} parent=1 // pred_check
      _
    $region15: #{tpu_custom_call.1} parent=1 // pred_check_branch
      %56 = sbr.rel (0) target = $region17
    $region16: #{tpu_custom_call.1} parent=1 // pred_region
      %58 = vsyncadd [#allocation9], 0
      %s59 = sshll.u32 %s3, 4
      %s60 = int_to_ptr.hbm [resolvable:$true] %s59
      %s61 = sshll.u32 [#allocation8], 4
      %s62 = int_to_ptr.vmem [resolvable:$true] %s61
      %67 = dma.hbm_to_vmem [thread:$0]  %s60, 1024, %s62, [#allocation9], 128, 128, 8
    $region17: #{tpu_custom_call.1} parent=1 // pred_fallthru
      _
    // Predicated region
    $region18: #{tpu_custom_call.1} parent=1 // pred_check
      _
    $region19: #{tpu_custom_call.1} parent=1 // pred_check_branch
      %69 = sbr.rel (0) target = $region21
    $region20: #{tpu_custom_call.1} parent=1 // pred_region
      _
    $region21: #{tpu_custom_call.1} parent=1 // pred_fallthru
      _
    // Predicated region
    $region22: #{tpu_custom_call.1} parent=1 // pred_check
      _
    $region23: #{tpu_custom_call.1} parent=1 // pred_check_branch
      %71 = sbr.rel (0) target = $region25
    $region24: #{tpu_custom_call.1} parent=1 // pred_region
      %73 = dma.done [#allocation3], 256
    $region25: #{tpu_custom_call.1} parent=1 // pred_fallthru
      _
    // Predicated region
    $region26: #{tpu_custom_call.1} parent=1 // pred_check
      _
    $region27: #{tpu_custom_call.1} parent=1 // pred_check_branch
      %75 = sbr.rel (0) target = $region29
    $region28: #{tpu_custom_call.1} parent=1 // pred_region
      %77 = dma.done [#allocation6], 2048
    $region29: #{tpu_custom_call.1} parent=1 // pred_fallthru
      _
    // Predicated region
    $region30: #{tpu_custom_call.1} parent=1 // pred_check
      _
    $region31: #{tpu_custom_call.1} parent=1 // pred_check_branch
      %79 = sbr.rel (0) target = $region33
    $region32: #{tpu_custom_call.1} parent=1 // pred_region
      %81 = dma.done [#allocation6], 32
    $region33: #{tpu_custom_call.1} parent=1 // pred_fallthru
      _
    // Predicated region
    $region34: #{tpu_custom_call.1} parent=1 // pred_check
      _
    $region35: #{tpu_custom_call.1} parent=1 // pred_check_branch
      %83 = sbr.rel (0) target = $region37
    $region36: #{tpu_custom_call.1} parent=1 // pred_region
      %85 = dma.done [#allocation9], 1024
    $region37: #{tpu_custom_call.1} parent=1 // pred_fallthru
      _
    %v86 = vld [vmem:[#allocation2] sm:$0xff]
    %v87 = vld [vmem:[#allocation2 + $0x8] sm:$0xff]
    %v88 = vld [vmem:[#allocation5] sm:$0xff]
    %v89 = vld [vmem:[#allocation5 + $0x8] sm:$0xff]
    %v90 = vld [vmem:[#allocation5 + $0x10] sm:$0xff]
    %v91 = vld [vmem:[#allocation5 + $0x18] sm:$0xff]
    %v92 = vld [vmem:[#allocation5 + $0x20] sm:$0xff]
    %v93 = vld [vmem:[#allocation5 + $0x28] sm:$0xff]
    %v94 = vld [vmem:[#allocation5 + $0x30] sm:$0xff]
    %v95 = vld [vmem:[#allocation5 + $0x38] sm:$0xff]
    %v96 = vld [vmem:[#allocation5 + $0x40] sm:$0xff]
    %v97 = vld [vmem:[#allocation5 + $0x48] sm:$0xff]
    %v98 = vld [vmem:[#allocation5 + $0x50] sm:$0xff]
    %v99 = vld [vmem:[#allocation5 + $0x58] sm:$0xff]
    %v100 = vld [vmem:[#allocation5 + $0x60] sm:$0xff]
    %v101 = vld [vmem:[#allocation5 + $0x68] sm:$0xff]
    %v102 = vld [vmem:[#allocation5 + $0x70] sm:$0xff]
    %v103 = vld [vmem:[#allocation5 + $0x78] sm:$0xff]
    %v104 = vld [vmem:[#allocation7] sm:$0x3]
    %v106 = vperm.slane %v104, 0
    %v107 = vperm.slane %v104, 1
    %vm110 = vcmask 523264
    %v112 = vsel %vm110, %v86, 0
    %v115 = vsel %vm110, %v87, 0
    %117 = vmatpush.msra.mxu0 0.0
    %118 = vmatpush.msra.mxu0 0.0
    %119 = vmatpush.msra.mxu0 0.0
    %120 = vmatpush.msra.mxu0 0.0
    %121 = vmatpush.msra.mxu0 0.0
    %122 = vmatpush.msra.mxu0 0.0
    %123 = vmatpush.msra.mxu0 0.0
    %124 = vmatpush.msra.mxu0 0.0
    %125 = vmatpush.msra.mxu0 %v102
    %126 = vmatpush.msra.mxu0 %v100
    %127 = vmatpush.msra.mxu0 %v98
    %128 = vmatpush.msra.mxu0 %v96
    %129 = vmatpush.msra.mxu0 %v94
    %130 = vmatpush.msra.mxu0 %v92
    %131 = vmatpush.msra.mxu0 %v90
    %132 = vmatpush.msra.mxu0 %v88
    %133 = vmatmul.f32.gmra.mxu0 %v112
    %v134 = vpop.f32.mrf.mxu0
    %v135 = vadd.f32 %v106, %v134
    %136 = vmatmul.f32.gmra.mxu0 %v115
    %v137 = vpop.f32.mrf.mxu0
    %v138 = vadd.f32 %v106, %v137
    %139 = vdwg.mxu0
    %140 = vmatpush.msra.mxu0 0.0
    %141 = vmatpush.msra.mxu0 0.0
    %142 = vmatpush.msra.mxu0 0.0
    %143 = vmatpush.msra.mxu0 0.0
    %144 = vmatpush.msra.mxu0 0.0
    %145 = vmatpush.msra.mxu0 0.0
    %146 = vmatpush.msra.mxu0 0.0
    %147 = vmatpush.msra.mxu0 0.0
    %148 = vmatpush.msra.mxu0 %v103
    %149 = vmatpush.msra.mxu0 %v101
    %150 = vmatpush.msra.mxu0 %v99
    %151 = vmatpush.msra.mxu0 %v97
    %152 = vmatpush.msra.mxu0 %v95
    %153 = vmatpush.msra.mxu0 %v93
    %154 = vmatpush.msra.mxu0 %v91
    %155 = vmatpush.msra.mxu0 %v89
    %156 = vmatmul.f32.gmra.mxu0 %v112
    %v157 = vpop.f32.mrf.mxu0
    %v158 = vadd.f32 %v107, %v157
    %159 = vmatmul.f32.gmra.mxu0 %v115
    %v160 = vpop.f32.mrf.mxu0
    %v161 = vadd.f32 %v107, %v160
    %162 = vdwg.mxu0
    %165 = vrot.lane.b32.xlu0 %v135, 64
    %v166 = vpop.permute.xlu0 %165
    %167 = vrot.lane.b32.xlu0 %v138, 64
    %v168 = vpop.permute.xlu0 %167
    %171 = vst.msk [vmem:[#allocation11] sm:$0xff] %vm110, %v166
    %172 = vst.msk [vmem:[#allocation11 + $0x8] sm:$0xff] %vm110, %v168
    %173 = vst.msk [vmem:[#allocation13] sm:$0xff] %vm110, %v158
    %174 = vst.msk [vmem:[#allocation13 + $0x8] sm:$0xff] %vm110, %v161
    %v175 = vsel %vm110, %v135, 0
    %v177 = vsel %vm110, %v166, 0
    %179 = vmatpush.xpose.msra.mxu0 0.0
    %180 = vmatpush.xpose.msra.mxu0 0.0
    %181 = vmatpush.xpose.msra.mxu0 0.0
    %182 = vmatpush.xpose.msra.mxu0 0.0
    %183 = vmatpush.xpose.msra.mxu0 0.0
    %184 = vmatpush.xpose.msra.mxu0 0.0
    %185 = vmatpush.xpose.msra.mxu0 0.0
    %186 = vmatpush.xpose.msra.mxu0 0.0
    %187 = vmatpush.xpose.msra.mxu0 0.0
    %188 = vmatpush.xpose.msra.mxu0 0.0
    %189 = vmatpush.xpose.msra.mxu0 0.0
    %190 = vmatpush.xpose.msra.mxu0 0.0
    %191 = vmatpush.xpose.msra.mxu0 0.0
    %192 = vmatpush.xpose.msra.mxu0 0.0
    %193 = vmatpush.xpose.msra.mxu0 0.0
    %194 = vmatpush.xpose.msra.mxu0 %v177
    %195 = vmatmul.f32.gmra.mxu0 %v175
    %v196 = vpop.f32.mrf.mxu0
    %v197 = vadd.f32 0.0, %v196
    %198 = vdwg.mxu0
    %v199 = vsel %vm110, %v138, 0
    %v201 = vsel %vm110, %v168, 0
    %203 = vmatpush.xpose.msra.mxu0 0.0
    %204 = vmatpush.xpose.msra.mxu0 0.0
    %205 = vmatpush.xpose.msra.mxu0 0.0
    %206 = vmatpush.xpose.msra.mxu0 0.0
    %207 = vmatpush.xpose.msra.mxu0 0.0
    %208 = vmatpush.xpose.msra.mxu0 0.0
    %209 = vmatpush.xpose.msra.mxu0 0.0
    %210 = vmatpush.xpose.msra.mxu0 0.0
    %211 = vmatpush.xpose.msra.mxu0 0.0
    %212 = vmatpush.xpose.msra.mxu0 0.0
    %213 = vmatpush.xpose.msra.mxu0 0.0
    %214 = vmatpush.xpose.msra.mxu0 0.0
    %215 = vmatpush.xpose.msra.mxu0 0.0
    %216 = vmatpush.xpose.msra.mxu0 0.0
    %217 = vmatpush.xpose.msra.mxu0 0.0
    %218 = vmatpush.xpose.msra.mxu0 %v201
    %219 = vmatmul.f32.gmra.mxu0 %v199
    %v220 = vpop.f32.mrf.mxu0
    %v221 = vadd.f32 0.0, %v220
    %222 = vdwg.mxu0
    %v223 = vlaneseq
    %v224 = vshrl.u32 %v223, 7
    %v225 = vlaneseq
    %v226 = vand.u32 %v225, 127
    %vm227 = vcmp.gt.s32.totalorder %v226, %v224
    %v228 = vsel %vm227, -inf, %v197
    %v229 = vsel %vm227, -inf, %v221
    %vm230 = vcmask 64512
    %v231 = vsel %vm230, %v228, -inf
    %232 = vmax.xlane.f32.xlu0 %v231
    %v233 = vpop.xlane.xlu0 %232
    %v234 = vsel %vm230, %v229, -inf
    %235 = vmax.xlane.f32.xlu0 %v234
    %v236 = vpop.xlane.xlu0 %235
    %v237 = vsub.f32 %v228, %v233
    %v238 = vsub.f32 %v229, %v236
    %v239 = vmul.f32 %v237, 1.442695
    %v240 = vpow.pop %v239
    %v241 = vmul.f32 %v238, 1.442695
    %v242 = vpow.pop %v241
    %v243 = vsel %vm230, %v240, 0.0
    %244 = vadd.xlane.f32.xlu0 %v243
    %v245 = vpop.xlane.xlu0 %244
    %v246 = vsel %vm230, %v242, 0.0
    %247 = vadd.xlane.f32.xlu0 %v246
    %v248 = vpop.xlane.xlu0 %247
    %v249 = vrcp.pop %v245
    %v250 = vrcp.pop %v248
    %v251 = vmul.f32 %v240, %v249
    %v252 = vmul.f32 %v242, %v250
    %v254 = vsel %vm230, %v251, 0
    %256 = vmatpush.msra.mxu0 0.0
    %257 = vmatpush.msra.mxu0 0.0
    %258 = vmatpush.msra.mxu0 0.0
    %259 = vmatpush.msra.mxu0 0.0
    %260 = vmatpush.msra.mxu0 0.0
    %261 = vmatpush.msra.mxu0 0.0
    %262 = vmatpush.msra.mxu0 0.0
    %263 = vmatpush.msra.mxu0 0.0
    %264 = vmatpush.msra.mxu0 0.0
    %265 = vmatpush.msra.mxu0 0.0
    %266 = vmatpush.msra.mxu0 0.0
    %267 = vmatpush.msra.mxu0 0.0
    %268 = vmatpush.msra.mxu0 0.0
    %269 = vmatpush.msra.mxu0 0.0
    %270 = vmatpush.msra.mxu0 0.0
    %271 = vmatpush.msra.mxu0 %v158
    %272 = vmatmul.f32.gmra.mxu0 %v254
    %v273 = vpop.f32.mrf.mxu0
    %v274 = vadd.f32 0.0, %v273
    %275 = vdwg.mxu0
    %v277 = vsel %vm230, %v252, 0
    %279 = vmatpush.msra.mxu0 0.0
    %280 = vmatpush.msra.mxu0 0.0
    %281 = vmatpush.msra.mxu0 0.0
    %282 = vmatpush.msra.mxu0 0.0
    %283 = vmatpush.msra.mxu0 0.0
    %284 = vmatpush.msra.mxu0 0.0
    %285 = vmatpush.msra.mxu0 0.0
    %286 = vmatpush.msra.mxu0 0.0
    %287 = vmatpush.msra.mxu0 0.0
    %288 = vmatpush.msra.mxu0 0.0
    %289 = vmatpush.msra.mxu0 0.0
    %290 = vmatpush.msra.mxu0 0.0
    %291 = vmatpush.msra.mxu0 0.0
    %292 = vmatpush.msra.mxu0 0.0
    %293 = vmatpush.msra.mxu0 0.0
    %294 = vmatpush.msra.mxu0 %v161
    %295 = vmatmul.f32.gmra.mxu0 %v277
    %v296 = vpop.f32.mrf.mxu0
    %v297 = vadd.f32 0.0, %v296
    %298 = vdwg.mxu0
    %v299 = vld [vmem:[#allocation8] sm:$0xff]
    %v300 = vld [vmem:[#allocation8 + $0x8] sm:$0xff]
    %v301 = vld [vmem:[#allocation8 + $0x10] sm:$0xff]
    %v302 = vld [vmem:[#allocation8 + $0x18] sm:$0xff]
    %v303 = vld [vmem:[#allocation8 + $0x20] sm:$0xff]
    %v304 = vld [vmem:[#allocation8 + $0x28] sm:$0xff]
    %v305 = vld [vmem:[#allocation8 + $0x30] sm:$0xff]
    %v306 = vld [vmem:[#allocation8 + $0x38] sm:$0xff]
    %v307 = vld [vmem:[%s4] sm:$0x1]
    %v309 = vperm.slane %v307, 0
    %v312 = vsel %vm110, %v274, 0
    %v315 = vsel %vm110, %v297, 0
    %317 = vmatpush.msra.mxu0 0.0
    %318 = vmatpush.msra.mxu0 0.0
    %319 = vmatpush.msra.mxu0 0.0
    %320 = vmatpush.msra.mxu0 0.0
    %321 = vmatpush.msra.mxu0 0.0
    %322 = vmatpush.msra.mxu0 0.0
    %323 = vmatpush.msra.mxu0 0.0
    %324 = vmatpush.msra.mxu0 0.0
    %325 = vmatpush.msra.mxu0 %v306
    %326 = vmatpush.msra.mxu0 %v305
    %327 = vmatpush.msra.mxu0 %v304
    %328 = vmatpush.msra.mxu0 %v303
    %329 = vmatpush.msra.mxu0 %v302
    %330 = vmatpush.msra.mxu0 %v301
    %331 = vmatpush.msra.mxu0 %v300
    %332 = vmatpush.msra.mxu0 %v299
    %333 = vmatmul.f32.gmra.mxu0 %v312
    %v334 = vpop.f32.mrf.mxu0
    %v335 = vadd.f32 %v309, %v334
    %336 = vmatmul.f32.gmra.mxu0 %v315
    %v337 = vpop.f32.mrf.mxu0
    %v338 = vadd.f32 %v309, %v337
    %339 = vdwg.mxu0
    %340 = vst.msk [vmem:[#allocation10] sm:$0xff] %vm110, %v335
    %341 = vst.msk [vmem:[#allocation10 + $0x8] sm:$0xff] %vm110, %v338
    // Predicated region
    $region38: #{tpu_custom_call.1} parent=1 // pred_check
      _
    $region39: #{tpu_custom_call.1} parent=1 // pred_check_branch
      %343 = sbr.rel (0) target = $region41
    $region40: #{tpu_custom_call.1} parent=1 // pred_region
      %345 = vsyncadd [#allocation4], 0
      %s346 = sshll.u32 [#allocation10], 4
      %s347 = int_to_ptr.vmem [resolvable:$true] %s346
      %s348 = sshll.u32 %s5, 4
      %s349 = int_to_ptr.hbm [resolvable:$true] %s348
      %354 = dma.vmem_to_hbm [thread:$0]  %s347, 256, %s349, [#allocation4], 128, 128, 8
    $region41: #{tpu_custom_call.1} parent=1 // pred_fallthru
      _
    // Predicated region
    $region42: #{tpu_custom_call.1} parent=1 // pred_check
      _
    $region43: #{tpu_custom_call.1} parent=1 // pred_check_branch
      %356 = sbr.rel (0) target = $region45
    $region44: #{tpu_custom_call.1} parent=1 // pred_region
      %358 = vsyncadd [#allocation12], 0
      %s359 = sshll.u32 [#allocation11], 4
      %s360 = int_to_ptr.vmem [resolvable:$true] %s359
      %s361 = sshll.u32 %s6, 4
      %s362 = int_to_ptr.hbm [resolvable:$true] %s361
      %367 = dma.vmem_to_hbm [thread:$0]  %s360, 256, %s362, [#allocation12], 128, 128, 8
    $region45: #{tpu_custom_call.1} parent=1 // pred_fallthru
      _
    // Predicated region
    $region46: #{tpu_custom_call.1} parent=1 // pred_check
      _
    $region47: #{tpu_custom_call.1} parent=1 // pred_check_branch
      %369 = sbr.rel (0) target = $region49
    $region48: #{tpu_custom_call.1} parent=1 // pred_region
      %371 = vsyncadd [#allocation12], 0
      %s372 = sshll.u32 [#allocation13], 4
      %s373 = int_to_ptr.vmem [resolvable:$true] %s372
      %s374 = sshll.u32 %s7, 4
      %s375 = int_to_ptr.hbm [resolvable:$true] %s374
      %380 = dma.vmem_to_hbm [thread:$0]  %s373, 256, %s375, [#allocation12], 128, 128, 8
    $region49: #{tpu_custom_call.1} parent=1 // pred_fallthru
      _
    // Predicated region
    $region50: #{tpu_custom_call.1} parent=1 // pred_check
      _
    $region51: #{tpu_custom_call.1} parent=1 // pred_check_branch
      %382 = sbr.rel (0) target = $region53
    $region52: #{tpu_custom_call.1} parent=1 // pred_region
      %384 = dma.done [#allocation4], 256
    $region53: #{tpu_custom_call.1} parent=1 // pred_fallthru
      _
    // Predicated region
    $region54: #{tpu_custom_call.1} parent=1 // pred_check
      _
    $region55: #{tpu_custom_call.1} parent=1 // pred_check_branch
      %386 = sbr.rel (0) target = $region57
    $region56: #{tpu_custom_call.1} parent=1 // pred_region
      %388 = dma.done [#allocation12], 256
    $region57: #{tpu_custom_call.1} parent=1 // pred_fallthru
      _
    // Predicated region
    $region58: #{tpu_custom_call.1} parent=1 // pred_check
      _
    $region59: #{tpu_custom_call.1} parent=1 // pred_check_branch
      %390 = sbr.rel (0) target = $region61
    $region60: #{tpu_custom_call.1} parent=1 // pred_region
      %392 = dma.done [#allocation12], 256
    $region61: #{tpu_custom_call.1} parent=1 // pred_fallthru
      _
    %393 = vsyncpa [#allocation3], 1
    %394 = vsyncpa [#allocation6], 1
    %395 = vsyncpa [#allocation9], 1
    %396 = vsyncpa [#allocation4], 1
    %397 = vsyncpa [#allocation12], 1

</llo_original>
